<compile_context>
chip_gen: v7x
topology: tpu7x:2x2x1
jax: 0.10.0
libtpu: 0.0.40
codegen_flags: <defaults>
</compile_context>

<pallas_src>
import functools

import jax
import jax.numpy as jnp
from jax import lax
from jax.experimental import pallas as pl
from jax.experimental.pallas import tpu as pltpu


_DOC_BLOCK = 8                 # doc-batch elements per grid step (sublane tile);
                               # keep grid length >= 2 on v7x so both TCs get work
_N_CHUNK_BUDGET = 4 << 20      # bytes budget for the per-chunk f32 similarity slab
_COMPILER_PARAMS = pltpu.CompilerParams(
    dimension_semantics=("parallel",),      # doc tiles are independent -> megacore
    vmem_limit_bytes=64 * 1024 * 1024,      # raise scoped VMEM (defaults 16/32/32 MiB)
)


# -----------------------------------------------------------------------------
# Capability probe: single-buffered constant-index residents (pl.Buffered(1)).
# -----------------------------------------------------------------------------
def _probe_single_buffer_residents():
    """True iff BlockSpec(pipeline_mode=pl.Buffered(1)) lowers on this backend.

    Constant-index residents are DMA'd only once, but default double-buffering
    still reserves 2x VMEM for them; Buffered(1) halves that (matters most on
    v5e's 16 MiB and v7x's per-core 32 MiB scoped defaults).  Probed eagerly at
    import so an unsupported combination silently falls back.
    """
    if not hasattr(pl, "Buffered"):
        return False

    def _k(a_ref, b_ref, o_ref):
        o_ref[...] = a_ref[...] + b_ref[...]

    try:
        fn = pl.pallas_call(
            _k,
            out_shape=jax.ShapeDtypeStruct((16, 128), jnp.float32),
            grid=(2,),
            in_specs=[
                pl.BlockSpec((8, 128), lambda i: (0, 0),
                             pipeline_mode=pl.Buffered(1)),
                pl.BlockSpec((8, 128), lambda i: (i, 0)),
            ],
            out_specs=pl.BlockSpec((8, 128), lambda i: (i, 0)),
        )
        jax.block_until_ready(fn(jnp.zeros((8, 128), jnp.float32),
                                 jnp.zeros((16, 128), jnp.float32)))
        return True
    except Exception:  # noqa: BLE001 -- any failure => default double-buffering
        return False


_SINGLE_BUFFER_RESIDENTS = _probe_single_buffer_residents()


def _resident_spec(block_shape):
    """Spec for a VMEM-resident 2-D input (constant index map, fetched once)."""
    index_map = lambda c: (0, 0)
    if _SINGLE_BUFFER_RESIDENTS:
        return pl.BlockSpec(block_shape, index_map, pipeline_mode=pl.Buffered(1))
    return pl.BlockSpec(block_shape, index_map)


# -----------------------------------------------------------------------------
# Kernels
# -----------------------------------------------------------------------------
def _maxsim_tile(d_ref, qT_ref, g_ref, out_ref, max_ref, ns, n_chunk):
    """MaxSim scores for one tile of docs against every query (transposed).

    d_ref  : (tc*ns, D)      bf16  tc doc-batch elements, token-flattened (streamed)
    qT_ref : (D, n_tot)      bf16  all query tokens, pre-transposed (resident)
    g_ref  : (n_tot, b_pad)  bf16  0/1 query-token -> query group-sum matrix (resident)
    out_ref: (tc, b_pad)     f32   out[i, b] = score(query b, doc tile_start + i)
    max_ref: (tc, n_tot)     f32   scratch: per-doc max over its own tokens
    """
    tc = out_ref.shape[0]
    n_tot = qT_ref.shape[1]
    n_chunks = n_tot // n_chunk
    dm = d_ref[...]                      # one tall MXU LHS covering all tc docs

    def one_chunk(c0):
        # MXU: all tc docs' tokens vs a lane-chunk of query tokens, f32 accumulate.
        s = jnp.dot(dm, qT_ref[:, pl.ds(c0, n_chunk)],
                    preferred_element_type=jnp.float32)        # (tc*ns, n_chunk)
        for i in range(tc):              # static; cheap XLU sublane reduces
            max_ref[pl.ds(i, 1), pl.ds(c0, n_chunk)] = jnp.max(
                s[i * ns:(i + 1) * ns, :], axis=0, keepdims=True)

    if n_chunks == 1:
        one_chunk(0)
    else:
        # fori_loop (not a static unroll) bounds the live range of the per-chunk
        # f32 similarity intermediate (keeps VMEM/vreg pressure low on v7x/v5e).
        def chunk_body(c, carry):
            one_chunk(pl.multiple_of(c * n_chunk, n_chunk))
            return carry
        lax.fori_loop(0, n_chunks, chunk_body, 0)

    # ONE batched group-sum matmul per tile ((tc, n_tot) x (n_tot, b_pad)) with
    # bf16 operands (full-rate MXU), f32 accumulation, single lane-dense store.
    out_ref[...] = jnp.dot(max_ref[...].astype(g_ref.dtype), g_ref[...],
                           preferred_element_type=jnp.float32)


def _scores_kernel(g_ref, qT_ref, d_ref, o_ref, max_ref, *, ns, n_chunk):
    """Student-only MaxSim scores for one tile of doc-batch elements."""
    _maxsim_tile(d_ref, qT_ref, g_ref, o_ref, max_ref, ns, n_chunk)


def _fused_scores_kernel(*refs, ns_s, ns_t, n_chunk_s, n_chunk_t, share_g):
    """Student + teacher MaxSim scores fused into one pass over the doc tiles."""
    if share_g:
        (g_s, qT_ref, tqT_ref, d_ref, td_ref,
         so_ref, to_ref, smax_ref, tmax_ref) = refs
        g_t = g_s
    else:
        (g_s, g_t, qT_ref, tqT_ref, d_ref, td_ref,
         so_ref, to_ref, smax_ref, tmax_ref) = refs
    _maxsim_tile(d_ref, qT_ref, g_s, so_ref, smax_ref, ns_s, n_chunk_s)
    _maxsim_tile(td_ref, tqT_ref, g_t, to_ref, tmax_ref, ns_t, n_chunk_t)


# -----------------------------------------------------------------------------
# Wrapper helpers
# -----------------------------------------------------------------------------
def _ceil_to(x, m):
    return ((x + m - 1) // m) * m


def _prep_queries(q, compute_dtype):
    """(B, Nq, D) -> (D, B*Nq), cast to the MXU compute dtype (done once in XLA)."""
    b, nq, dmodel = q.shape
    return q.reshape(b * nq, dmodel).T.astype(compute_dtype)


def _prep_docs(d, bc_pad, compute_dtype):
    """(Bc, Ns, D) -> zero-pad doc batch to bc_pad, token-flatten to (bc_pad*Ns, D)."""
    bc, ns, dmodel = d.shape
    if bc_pad != bc:
        d = jnp.pad(d, ((0, bc_pad - bc), (0, 0), (0, 0)))
    return d.reshape(bc_pad * ns, dmodel).astype(compute_dtype)


def _group_sum_matrix(batch, n_tokens, padded_cols, dtype):
    """(batch*n_tokens, padded_cols) with G[b*n_tokens + n, b] = 1 (0/1 -> exact)."""
    rows = batch * n_tokens
    grp = (jnp.arange(rows, dtype=jnp.int32) // n_tokens)[:, None]
    col = jnp.arange(padded_cols, dtype=jnp.int32)[None, :]
    return (grp == col).astype(dtype)


def _pick_n_chunk(n_total, rows):
    """Column chunk of the (rows, n_total) f32 similarity intermediate (v7x VMEM)."""
    if n_total % 128 != 0 or rows * n_total * 4 <= _N_CHUNK_BUDGET:
        return n_total
    max_cols = max(128, (_N_CHUNK_BUDGET // (rows * 4)) // 128 * 128)
    best = 128
    for cols in range(128, min(max_cols, n_total) + 1, 128):
        if n_total % cols == 0:
            best = cols
    return best


# -----------------------------------------------------------------------------
# Score wrappers (pallas_call)
# -----------------------------------------------------------------------------
def colbert_scores(q, d, *, compute_dtype=jnp.bfloat16, doc_block=_DOC_BLOCK):
    """scores[b, c] = sum_n max_s <q[b,n,:], d[c,s,:]>  ->  (B, Bc) float32."""
    B, Nq, D = q.shape
    Bc, Ns, Dc = d.shape
    assert D == Dc, "emb_dim mismatch"

    tc = min(doc_block, Bc)
    bc_pad = _ceil_to(Bc, tc)               # never let the doc tile collapse to 1
    b_pad = _ceil_to(B, 128)                # lane-dense output stores
    n_tot = B * Nq

    qT = _prep_queries(q, compute_dtype)
    dflat = _prep_docs(d, bc_pad, compute_dtype)
    g = _group_sum_matrix(B, Nq, b_pad, compute_dtype)
    n_chunk = _pick_n_chunk(n_tot, tc * Ns)

    kernel = functools.partial(_scores_kernel, ns=Ns, n_chunk=n_chunk)
    scores_t = pl.pallas_call(
        kernel,
        out_shape=jax.ShapeDtypeStruct((bc_pad, b_pad), jnp.float32),
        grid=(bc_pad // tc,),
        in_specs=[
            _resident_spec((n_tot, b_pad)),                  # group-sum matrix
            _resident_spec((D, n_tot)),                      # all query tokens
            pl.BlockSpec((tc * Ns, D), lambda c: (c, 0)),    # streamed doc tile
        ],
        out_specs=pl.BlockSpec((tc, b_pad), lambda c: (c, 0)),
        scratch_shapes=[pltpu.VMEM((tc, n_tot), jnp.float32)],
        compiler_params=_COMPILER_PARAMS,
    )(g, qT, dflat)
    return scores_t[:Bc, :B].T


def colbert_scores_fused(q, d, tq, td, *, compute_dtype=jnp.bfloat16,
                         doc_block=_DOC_BLOCK):
    """Student and teacher MaxSim score matrices from one fused pallas_call."""
    B, Nq, D = q.shape
    Bc, Ns, Dc = d.shape
    Bt, Nqt, Dt = tq.shape
    Btc, Nst, Dtc = td.shape
    assert D == Dc and Dt == Dtc, "emb_dim mismatch"
    assert B == Bc == Bt == Btc, "Shape mismatch"

    tc = min(doc_block, Bc)
    bc_pad = _ceil_to(Bc, tc)
    b_pad = _ceil_to(B, 128)
    n_s, n_t = B * Nq, B * Nqt

    qT = _prep_queries(q, compute_dtype)
    tqT = _prep_queries(tq, compute_dtype)
    dflat = _prep_docs(d, bc_pad, compute_dtype)
    tdflat = _prep_docs(td, bc_pad, compute_dtype)

    share_g = (Nq == Nqt)                  # dedupe the resident group-sum matrix
    gs = _group_sum_matrix(B, Nq, b_pad, compute_dtype)
    g_specs, g_args = [_resident_spec((n_s, b_pad))], [gs]
    if not share_g:
        gt = _group_sum_matrix(B, Nqt, b_pad, compute_dtype)
        g_specs.append(_resident_spec((n_t, b_pad)))
        g_args.append(gt)

    n_chunk_s = _pick_n_chunk(n_s, tc * Ns)
    n_chunk_t = _pick_n_chunk(n_t, tc * Nst)
    kernel = functools.partial(_fused_scores_kernel, ns_s=Ns, ns_t=Nst,
                               n_chunk_s=n_chunk_s, n_chunk_t=n_chunk_t,
                               share_g=share_g)

    out_spec = pl.BlockSpec((tc, b_pad), lambda c: (c, 0))
    scores_t, tscores_t = pl.pallas_call(
        kernel,
        out_shape=(jax.ShapeDtypeStruct((bc_pad, b_pad), jnp.float32),
                   jax.ShapeDtypeStruct((bc_pad, b_pad), jnp.float32)),
        grid=(bc_pad // tc,),
        in_specs=g_specs + [
            _resident_spec((D, n_s)),                         # student queries
            _resident_spec((Dt, n_t)),                        # teacher queries
            pl.BlockSpec((tc * Ns, D), lambda c: (c, 0)),     # student doc tile
            pl.BlockSpec((tc * Nst, Dt), lambda c: (c, 0)),   # teacher doc tile
        ],
        out_specs=(out_spec, out_spec),
        scratch_shapes=[pltpu.VMEM((tc, n_s), jnp.float32),
                        pltpu.VMEM((tc, n_t), jnp.float32)],
        compiler_params=_COMPILER_PARAMS,
    )(*g_args, qT, tqT, dflat, tdflat)
    return scores_t[:Bc, :B].T, tscores_t[:Bc, :B].T


# -----------------------------------------------------------------------------
# Loss (forward pass of the PyTorch module)
# -----------------------------------------------------------------------------
def _contrastive_loss(scores):
    # TODO(synk): for B == 1 the off-diagonal max is -inf and softplus gives 0.
    pos = jnp.diag(scores)
    mask = jnp.eye(scores.shape[0], dtype=bool)
    neg = jnp.max(jnp.where(mask, -jnp.inf, scores), axis=1)
    return jnp.mean(jax.nn.softplus(neg - pos))


def colbert_pairwise_distill_loss(query_embeddings, doc_embeddings,
                                  teacher_query_outputs=None,
                                  teacher_doc_outputs=None,
                                  eval=False, alpha=0.3,
                                  compute_dtype=jnp.bfloat16):
    """Forward pass of ColBertPairwiseDistillLoss (returns a scalar)."""
    B = query_embeddings.shape[0]
    Bc = doc_embeddings.shape[0]
    if eval:
        assert B == Bc, "Shape mismatch"
        scores = colbert_scores(query_embeddings, doc_embeddings,
                                compute_dtype=compute_dtype)
        return _contrastive_loss(scores)

    Bt = teacher_query_outputs.shape[0]
    Btc = teacher_doc_outputs.shape[0]
    assert B == Bc == Bt == Btc, "Shape mismatch"

    scores, teacher_scores = colbert_scores_fused(
        query_embeddings, doc_embeddings,
        teacher_query_outputs, teacher_doc_outputs,
        compute_dtype=compute_dtype)

    contrastive = _contrastive_loss(scores)
    # PyTorch: MSELoss(scores.half(), teacher_scores.half()).  The subtraction is
    # done in fp16 like PyTorch; square/mean accumulate in f32 (slightly more
    # accurate -- intentional).
    diff = scores.astype(jnp.float16) - teacher_scores.astype(jnp.float16)
    mse = jnp.mean(jnp.square(diff.astype(jnp.float32)))
    return contrastive + alpha * mse


# -----------------------------------------------------------------------------
# Pure-JAX reference (same math; kernel's bf16 rounding of inputs and of the
# per-token maxes is modelled so the comparison is like-for-like).
# -----------------------------------------------------------------------------
def _reference_loss(q, d, tq=None, td=None, alpha=0.3, eval=False,
                    compute_dtype=jnp.bfloat16):
    cast = lambda x: x.astype(compute_dtype).astype(jnp.float32)

    def sc(a, b):
        s = jnp.einsum('bnd,csd->bcns', cast(a), cast(b))
        return cast(jnp.max(s, axis=3)).sum(axis=2)

    scores = sc(q, d)
    contrastive = _contrastive_loss(scores)
    if eval:
        return contrastive
    tscores = sc(tq, td)
    diff = scores.astype(jnp.float16) - tscores.astype(jnp.float16)
    mse = jnp.mean(jnp.square(diff.astype(jnp.float32)))
    return contrastive + alpha * mse


if __name__ == "__main__":
    alpha = 0.3
    keys = jax.random.split(jax.random.PRNGKey(0), 8)

    # --- main config: teacher dims == student dims (shared group-sum path) -----
    B, Nq, Ns, D = 4, 8, 16, 32
    query_embeddings = jax.random.normal(keys[0], (B, Nq, D), dtype=jnp.float32)
    doc_embeddings = jax.random.normal(keys[1], (B, Ns, D), dtype=jnp.float32)
    teacher_query_outputs = query_embeddings + 0.05 * jax.random.normal(
        keys[2], (B, Nq, D), dtype=jnp.float32)
    teacher_doc_outputs = doc_embeddings + 0.05 * jax.random.normal(
        keys[3], (B, Ns, D), dtype=jnp.float32)

    loss_fn = jax.jit(functools.partial(colbert_pairwise_distill_loss, alpha=alpha))
    loss = jax.block_until_ready(
        loss_fn(query_embeddings, doc_embeddings,
                teacher_query_outputs, teacher_doc_outputs))

    ref = _reference_loss(query_embeddings, doc_embeddings,
                          teacher_query_outputs, teacher_doc_outputs, alpha=alpha)
    assert jnp.allclose(loss, ref, rtol=2e-2, atol=2e-2), (loss, ref)

    # Coarse sanity check against full-f32 (PyTorch-equivalent) math — bf16 MXU
    # operands shift the scores slightly, so only loose agreement is expected.
    ref_f32 = _reference_loss(query_embeddings, doc_embeddings,
                              teacher_query_outputs, teacher_doc_outputs,
                              alpha=alpha, compute_dtype=jnp.float32)
    assert jnp.allclose(loss, ref_f32, rtol=2e-1, atol=2e-1), (loss, ref_f32)

    # --- eval path (contrastive only, student-only kernel) ---------------------
    eval_fn = jax.jit(functools.partial(colbert_pairwise_distill_loss, eval=True))
    eval_loss = jax.block_until_ready(eval_fn(query_embeddings, doc_embeddings))
    eval_ref = _reference_loss(query_embeddings, doc_embeddings, eval=True)
    assert jnp.allclose(eval_loss, eval_ref, rtol=2e-2, atol=2e-2), (eval_loss, eval_ref)

    # --- odd batch + teacher with different token counts -----------------------
    # Exercises doc-batch padding (tc=8, Bc_pad=16, grid=2) and the non-shared
    # group-sum path.
    B2, Nq2, Ns2, Nqt2, Nst2 = 10, 8, 16, 6, 12
    q2 = jax.random.normal(keys[4], (B2, Nq2, D), dtype=jnp.float32)
    d2 = jax.random.normal(keys[5], (B2, Ns2, D), dtype=jnp.float32)
    tq2 = jax.random.normal(keys[6], (B2, Nqt2, D), dtype=jnp.float32)
    td2 = jax.random.normal(keys[7], (B2, Nst2, D), dtype=jnp.float32)
    loss2 = jax.block_until_ready(loss_fn(q2, d2, tq2, td2))
    ref2 = _reference_loss(q2, d2, tq2, td2, alpha=alpha)
    assert jnp.allclose(loss2, ref2, rtol=2e-2, atol=2e-2), (loss2, ref2)

    print("KERNEL_OK")
</pallas_src>

<mosaic_0001>
module attributes {stable_mosaic.version = 11 : i64} {
  func.func @_k(%arg0: i32, %arg1: memref<8x128xf32, #tpu.memory_space<vmem>>, %arg2: memref<8x128xf32, #tpu.memory_space<vmem>>, %arg3: memref<8x128xf32, #tpu.memory_space<vmem>>) attributes {dimension_semantics = [#tpu.dimension_semantics<arbitrary>], iteration_bounds = array<i64: 2>, scalar_prefetch = 0 : i64, scratch_operands = 0 : i64, tpu.core_type = #tpu.core_type<tc>, window_params = [{pipeline_mode = #tpu.pipeline_mode<synchronous>, transform_indices = @transform_0, window_bounds = array<i64: 8, 128>}, {transform_indices = @transform_1, window_bounds = array<i64: 8, 128>}, {transform_indices = @transform_2, window_bounds = array<i64: 8, 128>}]} {
    %c0 = arith.constant 0 : index
    %c0_0 = arith.constant 0 : index
    %0 = vector.load %arg1[%c0, %c0_0] : memref<8x128xf32, #tpu.memory_space<vmem>>, vector<8x128xf32>
    %c0_1 = arith.constant 0 : index
    %c0_2 = arith.constant 0 : index
    %1 = vector.load %arg2[%c0_1, %c0_2] : memref<8x128xf32, #tpu.memory_space<vmem>>, vector<8x128xf32>
    %2 = arith.addf %0, %1 : vector<8x128xf32>
    %c0_3 = arith.constant 0 : index
    %c0_4 = arith.constant 0 : index
    %3 = vector.load %arg3[%c0_3, %c0_4] : memref<8x128xf32, #tpu.memory_space<vmem>>, vector<8x128xf32>
    tpu.vector_store %arg3[%c0_3, %c0_4], %2 {strides = array<i32>} : memref<8x128xf32, #tpu.memory_space<vmem>>, vector<8x128xf32>,
    return
  }
  func.func @transform_0(%arg0: i32) -> (i32, i32) {
    %c0_i32 = arith.constant 0 : i32
    %c0_i32_0 = arith.constant 0 : i32
    %c0_i32_1 = arith.constant 0 : i32
    return %c0_i32, %c0_i32_0 : i32, i32
  }
  func.func @transform_1(%arg0: i32) -> (i32, i32) {
    %c0_i32 = arith.constant 0 : i32
    %c0_i32_0 = arith.constant 0 : i32
    return %arg0, %c0_i32 : i32, i32
  }
  func.func @transform_2(%arg0: i32) -> (i32, i32) {
    %c0_i32 = arith.constant 0 : i32
    %c0_i32_0 = arith.constant 0 : i32
    return %arg0, %c0_i32 : i32, i32
  }
}

module attributes {stable_mosaic.version = 11 : i64} {
  func.func @_fused_scores_kernel(%arg0: i32, %arg1: memref<32x128xbf16, #tpu.memory_space<vmem>>, %arg2: memref<32x32xbf16, #tpu.memory_space<vmem>>, %arg3: memref<32x32xbf16, #tpu.memory_space<vmem>>, %arg4: memref<64x32xbf16, #tpu.memory_space<vmem>>, %arg5: memref<64x32xbf16, #tpu.memory_space<vmem>>, %arg6: memref<4x128xf32, #tpu.memory_space<vmem>>, %arg7: memref<4x128xf32, #tpu.memory_space<vmem>>, %arg8: memref<4x32xf32, #tpu.memory_space<vmem>>, %arg9: memref<4x32xf32, #tpu.memory_space<vmem>>) attributes {dimension_semantics = [#tpu.dimension_semantics<parallel>], iteration_bounds = array<i64: 1>, scalar_prefetch = 0 : i64, scratch_operands = 2 : i64, tpu.core_type = #tpu.core_type<tc>, window_params = [{pipeline_mode = #tpu.pipeline_mode<synchronous>, transform_indices = @transform_0, window_bounds = array<i64: 32, 128>}, {pipeline_mode = #tpu.pipeline_mode<synchronous>, transform_indices = @transform_1, window_bounds = array<i64: 32, 32>}, {pipeline_mode = #tpu.pipeline_mode<synchronous>, transform_indices = @transform_2, window_bounds = array<i64: 32, 32>}, {transform_indices = @transform_3, window_bounds = array<i64: 64, 32>}, {transform_indices = @transform_4, window_bounds = array<i64: 64, 32>}, {transform_indices = @transform_5, window_bounds = array<i64: 4, 128>}, {transform_indices = @transform_6, window_bounds = array<i64: 4, 128>}]} {
    %c0 = arith.constant 0 : index
    %c0_0 = arith.constant 0 : index
    %0 = vector.load %arg4[%c0, %c0_0] : memref<64x32xbf16, #tpu.memory_space<vmem>>, vector<64x32xbf16>
    %c0_1 = arith.constant 0 : index
    %c0_2 = arith.constant 0 : index
    %1 = vector.load %arg2[%c0_1, %c0_2] : memref<32x32xbf16, #tpu.memory_space<vmem>>, vector<32x32xbf16>
    %cst = arith.constant dense<0.000000e+00> : vector<64x32xf32>
    %2 = tpu.matmul %0, %1, %cst {dimension_numbers = #tpu.dot_dimension_numbers<[1], [0], [0], [1], [0, 0, 1, 1], [], []>} : vector<64x32xbf16>, vector<32x32xbf16>, vector<64x32xf32> -> vector<64x32xf32>
    %3 = vector.extract_strided_slice %2 {offsets = [0, 0], sizes = [16, 32], strides = [1, 1]} : vector<64x32xf32> to vector<16x32xf32>
    %cst_3 = arith.constant dense<0xFF800000> : vector<32xf32>
    %4 = vector.multi_reduction <maximumf>, %3, %cst_3 [0] : vector<16x32xf32> to vector<32xf32>
    %5 = vector.shape_cast %4 : vector<32xf32> to vector<1x32xf32>
    %c0_4 = arith.constant 0 : index
    %c0_5 = arith.constant 0 : index
    %6 = vector.load %arg8[%c0_4, %c0_5] : memref<4x32xf32, #tpu.memory_space<vmem>>, vector<1x32xf32>
    tpu.vector_store %arg8[%c0_4, %c0_5], %5 {strides = array<i32>} : memref<4x32xf32, #tpu.memory_space<vmem>>, vector<1x32xf32>,
    %7 = vector.extract_strided_slice %2 {offsets = [16, 0], sizes = [16, 32], strides = [1, 1]} : vector<64x32xf32> to vector<16x32xf32>
    %cst_6 = arith.constant dense<0xFF800000> : vector<32xf32>
    %8 = vector.multi_reduction <maximumf>, %7, %cst_6 [0] : vector<16x32xf32> to vector<32xf32>
    %9 = vector.shape_cast %8 : vector<32xf32> to vector<1x32xf32>
    %c1 = arith.constant 1 : index
    %c0_7 = arith.constant 0 : index
    %10 = vector.load %arg8[%c1, %c0_7] : memref<4x32xf32, #tpu.memory_space<vmem>>, vector<1x32xf32>
    tpu.vector_store %arg8[%c1, %c0_7], %9 {strides = array<i32>} : memref<4x32xf32, #tpu.memory_space<vmem>>, vector<1x32xf32>,
    %11 = vector.extract_strided_slice %2 {offsets = [32, 0], sizes = [16, 32], strides = [1, 1]} : vector<64x32xf32> to vector<16x32xf32>
    %cst_8 = arith.constant dense<0xFF800000> : vector<32xf32>
    %12 = vector.multi_reduction <maximumf>, %11, %cst_8 [0] : vector<16x32xf32> to vector<32xf32>
    %13 = vector.shape_cast %12 : vector<32xf32> to vector<1x32xf32>
    %c2 = arith.constant 2 : index
    %c0_9 = arith.constant 0 : index
    %14 = vector.load %arg8[%c2, %c0_9] : memref<4x32xf32, #tpu.memory_space<vmem>>, vector<1x32xf32>
    tpu.vector_store %arg8[%c2, %c0_9], %13 {strides = array<i32>} : memref<4x32xf32, #tpu.memory_space<vmem>>, vector<1x32xf32>,
    %15 = vector.extract_strided_slice %2 {offsets = [48, 0], sizes = [16, 32], strides = [1, 1]} : vector<64x32xf32> to vector<16x32xf32>
    %cst_10 = arith.constant dense<0xFF800000> : vector<32xf32>
    %16 = vector.multi_reduction <maximumf>, %15, %cst_10 [0] : vector<16x32xf32> to vector<32xf32>
    %17 = vector.shape_cast %16 : vector<32xf32> to vector<1x32xf32>
    %c3 = arith.constant 3 : index
    %c0_11 = arith.constant 0 : index
    %18 = vector.load %arg8[%c3, %c0_11] : memref<4x32xf32, #tpu.memory_space<vmem>>, vector<1x32xf32>
    tpu.vector_store %arg8[%c3, %c0_11], %17 {strides = array<i32>} : memref<4x32xf32, #tpu.memory_space<vmem>>, vector<1x32xf32>,
    %c0_12 = arith.constant 0 : index
    %c0_13 = arith.constant 0 : index
    %19 = vector.load %arg8[%c0_12, %c0_13] : memref<4x32xf32, #tpu.memory_space<vmem>>, vector<4x32xf32>
    %20 = arith.truncf %19 : vector<4x32xf32> to vector<4x32xbf16>
    %c0_14 = arith.constant 0 : index
    %c0_15 = arith.constant 0 : index
    %21 = vector.load %arg1[%c0_14, %c0_15] : memref<32x128xbf16, #tpu.memory_space<vmem>>, vector<32x128xbf16>
    %cst_16 = arith.constant dense<0.000000e+00> : vector<4x128xf32>
    %22 = tpu.matmul %20, %21, %cst_16 {dimension_numbers = #tpu.dot_dimension_numbers<[1], [0], [0], [1], [0, 0, 1, 1], [], []>} : vector<4x32xbf16>, vector<32x128xbf16>, vector<4x128xf32> -> vector<4x128xf32>
    %c0_17 = arith.constant 0 : index
    %c0_18 = arith.constant 0 : index
    %23 = vector.load %arg6[%c0_17, %c0_18] : memref<4x128xf32, #tpu.memory_space<vmem>>, vector<4x128xf32>
    tpu.vector_store %arg6[%c0_17, %c0_18], %22 {strides = array<i32>} : memref<4x128xf32, #tpu.memory_space<vmem>>, vector<4x128xf32>,
    %c0_19 = arith.constant 0 : index
    %c0_20 = arith.constant 0 : index
    %24 = vector.load %arg5[%c0_19, %c0_20] : memref<64x32xbf16, #tpu.memory_space<vmem>>, vector<64x32xbf16>
    %c0_21 = arith.constant 0 : index
    %c0_22 = arith.constant 0 : index
    %25 = vector.load %arg3[%c0_21, %c0_22] : memref<32x32xbf16, #tpu.memory_space<vmem>>, vector<32x32xbf16>
    %cst_23 = arith.constant dense<0.000000e+00> : vector<64x32xf32>
    %26 = tpu.matmul %24, %25, %cst_23 {dimension_numbers = #tpu.dot_dimension_numbers<[1], [0], [0], [1], [0, 0, 1, 1], [], []>} : vector<64x32xbf16>, vector<32x32xbf16>, vector<64x32xf32> -> vector<64x32xf32>
    %27 = vector.extract_strided_slice %26 {offsets = [0, 0], sizes = [16, 32], strides = [1, 1]} : vector<64x32xf32> to vector<16x32xf32>
    %cst_24 = arith.constant dense<0xFF800000> : vector<32xf32>
    %28 = vector.multi_reduction <maximumf>, %27, %cst_24 [0] : vector<16x32xf32> to vector<32xf32>
    %29 = vector.shape_cast %28 : vector<32xf32> to vector<1x32xf32>
    %c0_25 = arith.constant 0 : index
    %c0_26 = arith.constant 0 : index
    %30 = vector.load %arg9[%c0_25, %c0_26] : memref<4x32xf32, #tpu.memory_space<vmem>>, vector<1x32xf32>
    tpu.vector_store %arg9[%c0_25, %c0_26], %29 {strides = array<i32>} : memref<4x32xf32, #tpu.memory_space<vmem>>, vector<1x32xf32>,
    %31 = vector.extract_strided_slice %26 {offsets = [16, 0], sizes = [16, 32], strides = [1, 1]} : vector<64x32xf32> to vector<16x32xf32>
    %cst_27 = arith.constant dense<0xFF800000> : vector<32xf32>
    %32 = vector.multi_reduction <maximumf>, %31, %cst_27 [0] : vector<16x32xf32> to vector<32xf32>
    %33 = vector.shape_cast %32 : vector<32xf32> to vector<1x32xf32>
    %c1_28 = arith.constant 1 : index
    %c0_29 = arith.constant 0 : index
    %34 = vector.load %arg9[%c1_28, %c0_29] : memref<4x32xf32, #tpu.memory_space<vmem>>, vector<1x32xf32>
    tpu.vector_store %arg9[%c1_28, %c0_29], %33 {strides = array<i32>} : memref<4x32xf32, #tpu.memory_space<vmem>>, vector<1x32xf32>,
    %35 = vector.extract_strided_slice %26 {offsets = [32, 0], sizes = [16, 32], strides = [1, 1]} : vector<64x32xf32> to vector<16x32xf32>
    %cst_30 = arith.constant dense<0xFF800000> : vector<32xf32>
    %36 = vector.multi_reduction <maximumf>, %35, %cst_30 [0] : vector<16x32xf32> to vector<32xf32>
    %37 = vector.shape_cast %36 : vector<32xf32> to vector<1x32xf32>
    %c2_31 = arith.constant 2 : index
    %c0_32 = arith.constant 0 : index
    %38 = vector.load %arg9[%c2_31, %c0_32] : memref<4x32xf32, #tpu.memory_space<vmem>>, vector<1x32xf32>
    tpu.vector_store %arg9[%c2_31, %c0_32], %37 {strides = array<i32>} : memref<4x32xf32, #tpu.memory_space<vmem>>, vector<1x32xf32>,
    %39 = vector.extract_strided_slice %26 {offsets = [48, 0], sizes = [16, 32], strides = [1, 1]} : vector<64x32xf32> to vector<16x32xf32>
    %cst_33 = arith.constant dense<0xFF800000> : vector<32xf32>
    %40 = vector.multi_reduction <maximumf>, %39, %cst_33 [0] : vector<16x32xf32> to vector<32xf32>
    %41 = vector.shape_cast %40 : vector<32xf32> to vector<1x32xf32>
    %c3_34 = arith.constant 3 : index
    %c0_35 = arith.constant 0 : index
    %42 = vector.load %arg9[%c3_34, %c0_35] : memref<4x32xf32, #tpu.memory_space<vmem>>, vector<1x32xf32>
    tpu.vector_store %arg9[%c3_34, %c0_35], %41 {strides = array<i32>} : memref<4x32xf32, #tpu.memory_space<vmem>>, vector<1x32xf32>,
    %c0_36 = arith.constant 0 : index
    %c0_37 = arith.constant 0 : index
    %43 = vector.load %arg9[%c0_36, %c0_37] : memref<4x32xf32, #tpu.memory_space<vmem>>, vector<4x32xf32>
    %44 = arith.truncf %43 : vector<4x32xf32> to vector<4x32xbf16>
    %c0_38 = arith.constant 0 : index
    %c0_39 = arith.constant 0 : index
    %45 = vector.load %arg1[%c0_38, %c0_39] : memref<32x128xbf16, #tpu.memory_space<vmem>>, vector<32x128xbf16>
    %cst_40 = arith.constant dense<0.000000e+00> : vector<4x128xf32>
    %46 = tpu.matmul %44, %45, %cst_40 {dimension_numbers = #tpu.dot_dimension_numbers<[1], [0], [0], [1], [0, 0, 1, 1], [], []>} : vector<4x32xbf16>, vector<32x128xbf16>, vector<4x128xf32> -> vector<4x128xf32>
    %c0_41 = arith.constant 0 : index
    %c0_42 = arith.constant 0 : index
    %47 = vector.load %arg7[%c0_41, %c0_42] : memref<4x128xf32, #tpu.memory_space<vmem>>, vector<4x128xf32>
    tpu.vector_store %arg7[%c0_41, %c0_42], %46 {strides = array<i32>} : memref<4x128xf32, #tpu.memory_space<vmem>>, vector<4x128xf32>,
    return
  }
  func.func @transform_0(%arg0: i32) -> (i32, i32) {
    %c0_i32 = arith.constant 0 : i32
    %c0_i32_0 = arith.constant 0 : i32
    %c0_i32_1 = arith.constant 0 : i32
    return %c0_i32, %c0_i32_0 : i32, i32
  }
  func.func @transform_1(%arg0: i32) -> (i32, i32) {
    %c0_i32 = arith.constant 0 : i32
    %c0_i32_0 = arith.constant 0 : i32
    %c0_i32_1 = arith.constant 0 : i32
    return %c0_i32, %c0_i32_0 : i32, i32
  }
  func.func @transform_2(%arg0: i32) -> (i32, i32) {
    %c0_i32 = arith.constant 0 : i32
    %c0_i32_0 = arith.constant 0 : i32
    %c0_i32_1 = arith.constant 0 : i32
    return %c0_i32, %c0_i32_0 : i32, i32
  }
  func.func @transform_3(%arg0: i32) -> (i32, i32) {
    %c0_i32 = arith.constant 0 : i32
    %c0_i32_0 = arith.constant 0 : i32
    return %arg0, %c0_i32 : i32, i32
  }
  func.func @transform_4(%arg0: i32) -> (i32, i32) {
    %c0_i32 = arith.constant 0 : i32
    %c0_i32_0 = arith.constant 0 : i32
    return %arg0, %c0_i32 : i32, i32
  }
  func.func @transform_5(%arg0: i32) -> (i32, i32) {
    %c0_i32 = arith.constant 0 : i32
    %c0_i32_0 = arith.constant 0 : i32
    return %arg0, %c0_i32 : i32, i32
  }
  func.func @transform_6(%arg0: i32) -> (i32, i32) {
    %c0_i32 = arith.constant 0 : i32
    %c0_i32_0 = arith.constant 0 : i32
    return %arg0, %c0_i32 : i32, i32
  }
}

</mosaic_0001>

<llo_original>
// kernel: tpu_custom_call.1
$region0: #{tpu_custom_call.1}
  #allocation0 [shape = 'u32[]', space=smem, size = 0x4, offset = 0x4, fixed_abs, tag = 'smem constant byte address 0x4 - core index']
  #allocation1 [shape = 'u32[144,128]{1,0:T(1,128)}', space=vmem, size = 0x12000, scoped, tag = 'internal scratch']
  %s0 = inlined_call_operand.hbm [shape: f32[8,128], index: 0, kind: input, shape index: {}]
  %s1 = inlined_call_operand.hbm [shape: f32[16,128], index: 1, kind: input, shape index: {}]
  %s2 = inlined_call_operand.hbm [shape: f32[16,128], index: 2, kind: output, shape index: {}]
  %s3 = sld [smem:[#allocation0]]
  $region49: #{tpu_custom_call.1} parent=0
    _
  %s5 = ssub.s32 1, %s3
  %s6 = scalar_select 0, %s5, %s3
  $region1: #{tpu_custom_call.1} parent=0
    #allocation2 [shape = 'u8[4096]{0}', space=vmem, size = 0x1000, scoped, tag = 'input window, operand 0, single buffered']
    #allocation3 [shape = 's32[2]{0}', space=sflag, size = 0x8, scoped, tag = 'scoped memory for tpu_custom_call.1']
    #allocation4 [shape = 's32[2]{0}', space=sflag, size = 0x8, scoped, tag = 'scoped memory for tpu_custom_call.1']
    #allocation5 [shape = 'u8[8192]{0}', space=vmem, size = 0x2000, scoped, tag = 'input window, operand 1']
    #allocation6 [shape = 's32[2]{0}', space=sflag, size = 0x8, scoped, tag = 'scoped memory for tpu_custom_call.1']
    #allocation7 [shape = 'u8[8192]{0}', space=vmem, size = 0x2000, scoped, tag = 'output window, operand 0']
    %7 = vsyncpa [#allocation3], 0
    %8 = vsyncpa [#allocation6], 0
    %s9 = scalar_lea.sflag [#allocation6], 1
    %10 = vsyncpa %s9, 0
    %11 = vsyncpa [#allocation4], 0
    %s12 = scalar_lea.sflag [#allocation4], 1
    %13 = vsyncpa %s12, 0
    loop: start=0, step=1, limit=4
    $region2: #{tpu_custom_call.1} parent=1 // loop_pre_header
      _
    $region3: #{tpu_custom_call.1} parent=1 // loop_header
      %s15 = sphi 0, %s19
      %p16 = scmp.ge.s32.totalorder %s15, 4
      %s23 = sphi 0, %s23
      %s25 = sphi 0, %s23
      %s26 = sphi 0, %s25
      %s40 = sphi 0, %s26
      %s46 = sphi 0, %s48
      %s49 = sphi 0, %s46
      %s50 = sphi 0, %s49
      %s66 = sphi 0, %s50
      %s72 = sphi 0, %s74
      %s75 = sphi 0, %s72
      %s76 = sphi 0, %s75
      %s92 = sphi 0, %s76
    $region4: #{tpu_custom_call.1} parent=1 // loop_header_branch
      %18 = sbr.rel (%p16) target = $region8
    $region5: #{tpu_custom_call.1} parent=1 // loop_body
      %s20 = ssub.s32 %s15, 1
      %s21 = ssub.s32 %s15, 2
      %s22 = sadd.s32 %s15, 1
      %s24 = sadd.s32 %s23, 1
      %p27 = scmp.eq.s32.totalorder %s15, 1
      %p28 = scmp.ne.s32.totalorder %s23, %s25
      %p29 = scmp.eq.s32.totalorder %s15, 0
      %p30 = por %p28, %p29
      %p31 = scmp.ne.s32.totalorder %s23, %s25
      %p32 = scmp.eq.s32.totalorder %s20, 1
      %p33 = por %p31, %p32
      %p34 = scmp.ne.s32.totalorder %s25, %s26
      %p35 = scmp.eq.s32.totalorder %s20, 0
      %p36 = por %p34, %p35
      %p37 = scmp.ne.s32.totalorder %s25, %s26
      %p38 = scmp.eq.s32.totalorder %s21, 1
      %p39 = por %p37, %p38
      %p41 = scmp.ne.s32.totalorder %s26, %s40
      %p42 = scmp.eq.s32.totalorder %s21, 0
      %p43 = por %p41, %p42
      %s44 = ssub.s32 %s15, %s22
      %p45 = scmp.eq.s32.totalorder %s44, 0
      %s47 = sadd.s32 %s46, 1
      %s48 = scalar_select %p45, %s46, %s47
      %p51 = pneg %p45
      %p52 = scmp.eq.s32.totalorder %s15, 1
      %p53 = por %p51, %p52
      %p54 = scmp.ne.s32.totalorder %s46, %s49
      %p55 = scmp.eq.s32.totalorder %s15, 0
      %p56 = por %p54, %p55
      %p57 = scmp.ne.s32.totalorder %s46, %s49
      %p58 = scmp.eq.s32.totalorder %s20, 1
      %p59 = por %p57, %p58
      %p60 = scmp.ne.s32.totalorder %s49, %s50
      %p61 = scmp.eq.s32.totalorder %s20, 0
      %p62 = por %p60, %p61
      %p63 = scmp.ne.s32.totalorder %s49, %s50
      %p64 = scmp.eq.s32.totalorder %s21, 1
      %p65 = por %p63, %p64
      %p67 = scmp.ne.s32.totalorder %s50, %s66
      %p68 = scmp.eq.s32.totalorder %s21, 0
      %p69 = por %p67, %p68
      %s70 = ssub.s32 %s15, %s22
      %p71 = scmp.eq.s32.totalorder %s70, 0
      %s73 = sadd.s32 %s72, 1
      %s74 = scalar_select %p71, %s72, %s73
      %p77 = pneg %p71
      %p78 = scmp.eq.s32.totalorder %s15, 1
      %p79 = por %p77, %p78
      %p80 = scmp.ne.s32.totalorder %s72, %s75
      %p81 = scmp.eq.s32.totalorder %s15, 0
      %p82 = por %p80, %p81
      %p83 = scmp.ne.s32.totalorder %s72, %s75
      %p84 = scmp.eq.s32.totalorder %s20, 1
      %p85 = por %p83, %p84
      %p86 = scmp.ne.s32.totalorder %s75, %s76
      %p87 = scmp.eq.s32.totalorder %s20, 0
      %p88 = por %p86, %p87
      %p89 = scmp.ne.s32.totalorder %s75, %s76
      %p90 = scmp.eq.s32.totalorder %s21, 1
      %p91 = por %p89, %p90
      %p93 = scmp.ne.s32.totalorder %s76, %s92
      %p94 = scmp.eq.s32.totalorder %s21, 0
      %p95 = por %p93, %p94
      %p96 = scmp.le.s32.totalorder 1, %s15
      %p97 = scmp.lt.s32.totalorder %s15, 3
      %p98 = pnand %p96, %p97
      %p99 = pneg %p98
      // Predicated region
      $region9: #{tpu_custom_call.1} parent=5 // pred_check
        _
      $region10: #{tpu_custom_call.1} parent=5 // pred_check_branch
        %101 = sbr.rel (%p98) target = $region12
      $region11: #{tpu_custom_call.1} parent=5 // pred_region
        %s102 = ssub.s32 %s15, 1
        // Predicated region
        $region13: #{tpu_custom_call.1} parent=11 // pred_check
          %p103 = pneg %p36
        $region14: #{tpu_custom_call.1} parent=11 // pred_check_branch
          %105 = sbr.rel (%p103) target = $region16
        $region15: #{tpu_custom_call.1} parent=11 // pred_region
          %s107 = ssub.s32 128, 128
          %108 = vsyncadd [#allocation3], %s107
          %s110 = sshll.u32 [#allocation2], 4
          %s111 = int_to_ptr.vmem [resolvable:$true] %s110
          %113 = dma.hbm_to_vmem [thread:$0]  %s0, 128, %s111, [#allocation3]
        $region16: #{tpu_custom_call.1} parent=11 // pred_fallthru
          _
      $region12: #{tpu_custom_call.1} parent=5 // pred_fallthru
        _
      %p114 = scmp.lt.s32.totalorder %s15, 2
      // Predicated region
      $region17: #{tpu_custom_call.1} parent=5 // pred_check
        %p115 = pneg %p114
      $region18: #{tpu_custom_call.1} parent=5 // pred_check_branch
        %117 = sbr.rel (%p115) target = $region20
      $region19: #{tpu_custom_call.1} parent=5 // pred_region
        // Predicated region
        $region21: #{tpu_custom_call.1} parent=19 // pred_check
          %p118 = pneg %p56
        $region22: #{tpu_custom_call.1} parent=19 // pred_check_branch
          %120 = sbr.rel (%p118) target = $region24
        $region23: #{tpu_custom_call.1} parent=19 // pred_region
          %s121 = sand.u32 %s46, 1
          %s122 = scalar_lea.sflag [#allocation6], %s121
          %s123 = sand.u32 %s46, 1
          %s124 = smul.addr %s123, 8
          %s125 = scalar_lea.vmem [#allocation5], %s124
          %s127 = ssub.s32 128, 128
          %128 = vsyncadd %s122, %s127
          %s129 = smul.addr %s15, 128
          %s130 = scalar_lea.hbm %s1, %s129
          %s132 = sshll.u32 %s125, 4
          %s133 = int_to_ptr.vmem [resolvable:$true] %s132
          %135 = dma.hbm_to_vmem [thread:$0]  %s130, 128, %s133, %s122
        $region24: #{tpu_custom_call.1} parent=19 // pred_fallthru
          _
      $region20: #{tpu_custom_call.1} parent=5 // pred_fallthru
        _
      %p136 = scmp.le.s32.totalorder 1, %s15
      %p137 = scmp.lt.s32.totalorder %s15, 3
      %p138 = pnand %p136, %p137
      %p139 = pneg %p138
      // Predicated region
      $region25: #{tpu_custom_call.1} parent=5 // pred_check
        _
      $region26: #{tpu_custom_call.1} parent=5 // pred_check_branch
        %141 = sbr.rel (%p138) target = $region28
      $region27: #{tpu_custom_call.1} parent=5 // pred_region
        %s142 = ssub.s32 %s15, 1
        // Predicated region
        $region29: #{tpu_custom_call.1} parent=27 // pred_check
          %p143 = pneg %p36
        $region30: #{tpu_custom_call.1} parent=27 // pred_check_branch
          %145 = sbr.rel (%p143) target = $region32
        $region31: #{tpu_custom_call.1} parent=27 // pred_region
          %146 = dma.done [#allocation3], 128
        $region32: #{tpu_custom_call.1} parent=27 // pred_fallthru
          _
        %s147 = sand.u32 %s49, 1
        %s148 = scalar_lea.sflag [#allocation6], %s147
        %s149 = sand.u32 %s49, 1
        %s150 = smul.addr %s149, 8
        %s151 = scalar_lea.vmem [#allocation5], %s150
        // Predicated region
        $region33: #{tpu_custom_call.1} parent=27 // pred_check
          %p152 = pneg %p62
        $region34: #{tpu_custom_call.1} parent=27 // pred_check_branch
          %154 = sbr.rel (%p152) target = $region36
        $region35: #{tpu_custom_call.1} parent=27 // pred_region
          %155 = dma.done %s148, 128
        $region36: #{tpu_custom_call.1} parent=27 // pred_fallthru
          _
        %p156 = pneg %p36
        %p157 = pneg %p33
        %s158 = sand.u32 %s49, 1
        %s159 = scalar_lea.sflag [#allocation6], %s158
        %s160 = sand.u32 %s49, 1
        %s161 = smul.addr %s160, 8
        %s162 = scalar_lea.vmem [#allocation5], %s161
        %p163 = pneg %p62
        %p164 = pneg %p59
        %p165 = pneg %p88
        %p166 = pneg %p85
        %s167 = sand.u32 %s75, 1
        %s168 = scalar_lea.sflag [#allocation4], %s167
        %s169 = sand.u32 %s75, 1
        %s170 = smul.addr %s169, 8
        %s171 = scalar_lea.vmem [#allocation7], %s170
        %v172 = vld [vmem:[#allocation2] sm:$0xff]
        %v173 = vld [vmem:[%s151] sm:$0xff]
        %v174 = vadd.f32 %v172, %v173
        %175 = vst [vmem:[%s171] sm:$0xff] %v174
        %s176 = sand.u32 %s75, 1
        %s177 = scalar_lea.sflag [#allocation4], %s176
        %s178 = sand.u32 %s75, 1
        %s179 = smul.addr %s178, 8
        %s180 = scalar_lea.vmem [#allocation7], %s179
        // Predicated region
        $region37: #{tpu_custom_call.1} parent=27 // pred_check
          %p181 = pneg %p85
        $region38: #{tpu_custom_call.1} parent=27 // pred_check_branch
          %183 = sbr.rel (%p181) target = $region40
        $region39: #{tpu_custom_call.1} parent=27 // pred_region
          %s185 = ssub.s32 128, 128
          %186 = vsyncadd %s177, %s185
          %s187 = smul.addr %s20, 128
          %s188 = scalar_lea.hbm %s2, %s187
          %s190 = sshll.u32 %s180, 4
          %s191 = int_to_ptr.vmem [resolvable:$true] %s190
          %193 = dma.vmem_to_hbm [thread:$0]  %s191, 128, %s188, %s177
        $region40: #{tpu_custom_call.1} parent=27 // pred_fallthru
          _
      $region28: #{tpu_custom_call.1} parent=5 // pred_fallthru
        _
      %p194 = scmp.le.s32.totalorder 2, %s15
      // Predicated region
      $region41: #{tpu_custom_call.1} parent=5 // pred_check
        %p195 = pneg %p194
      $region42: #{tpu_custom_call.1} parent=5 // pred_check_branch
        %197 = sbr.rel (%p195) target = $region44
      $region43: #{tpu_custom_call.1} parent=5 // pred_region
        %s198 = ssub.s32 %s15, 2
        // Predicated region
        $region45: #{tpu_custom_call.1} parent=43 // pred_check
          %p199 = pneg %p91
        $region46: #{tpu_custom_call.1} parent=43 // pred_check_branch
          %201 = sbr.rel (%p199) target = $region48
        $region47: #{tpu_custom_call.1} parent=43 // pred_region
          %s202 = sand.u32 %s76, 1
          %s203 = scalar_lea.sflag [#allocation4], %s202
          %s204 = sand.u32 %s76, 1
          %s205 = smul.addr %s204, 8
          %s206 = scalar_lea.vmem [#allocation7], %s205
          %207 = dma.done %s203, 128
        $region48: #{tpu_custom_call.1} parent=43 // pred_fallthru
          _
      $region44: #{tpu_custom_call.1} parent=5 // pred_fallthru
        _
    $region6: #{tpu_custom_call.1} parent=1 // loop_footer
      %s19 = sadd.s32 1, %s15
    $region7: #{tpu_custom_call.1} parent=1 // loop_footer_branch
      %14 = sbr.rel target = $region3
    $region8: #{tpu_custom_call.1} parent=1 // loop_exit
      _
    %208 = vsyncpa [#allocation3], 1
    %s209 = scalar_lea.sflag [#allocation3], 1
    %210 = vsyncpa %s209, 1
    %211 = vsyncpa [#allocation6], 1
    %s212 = scalar_lea.sflag [#allocation6], 1
    %213 = vsyncpa %s212, 1
    %214 = vsyncpa [#allocation4], 1
    %s215 = scalar_lea.sflag [#allocation4], 1
    %216 = vsyncpa %s215, 1

// kernel: colbert_pairwise_distill_loss.1
$region0: #{colbert_pairwise_distill_loss.1}
  #allocation0 [shape = 'u32[]', space=smem, size = 0x4, offset = 0x4, fixed_abs, tag = 'smem constant byte address 0x4 - core index']
  #allocation1 [shape = 'u32[144,128]{1,0:T(1,128)}', space=vmem, size = 0x12000, scoped, tag = 'internal scratch']
  #allocation2 [shape = 'f32[4,32]{1,0:T(4,128)}', space=vmem, size = 0x800, scoped, tag = 'scratch operand']
  #allocation3 [shape = 'f32[4,32]{1,0:T(4,128)}', space=vmem, size = 0x800, scoped, tag = 'scratch operand']
  %s0 = inlined_call_operand.hbm [shape: bf16[32,128], index: 0, kind: input, shape index: {}]
  %s1 = inlined_call_operand.hbm [shape: bf16[32,32], index: 1, kind: input, shape index: {}]
  %s2 = inlined_call_operand.hbm [shape: bf16[32,32], index: 2, kind: input, shape index: {}]
  %s3 = inlined_call_operand.hbm [shape: bf16[64,32], index: 3, kind: input, shape index: {}]
  %s4 = inlined_call_operand.hbm [shape: bf16[64,32], index: 4, kind: input, shape index: {}]
  %s5 = inlined_call_operand.hbm [shape: f32[4,128], index: 5, kind: output, shape index: {0}]
  %s6 = inlined_call_operand.hbm [shape: f32[4,128], index: 6, kind: output, shape index: {1}]
  %7 = xla_tuple %s5, %s6
  %s8 = sld [smem:[#allocation0]]
  $region58: #{colbert_pairwise_distill_loss.1} parent=0
    _
  %s10 = ssub.s32 1, %s8
  %s11 = scalar_select 0, %s10, %s8
  $region1: #{colbert_pairwise_distill_loss.1} parent=0
    #allocation4 [shape = 'u8[8192]{0}', space=vmem, size = 0x2000, scoped, tag = 'input window, operand 0, single buffered']
    #allocation5 [shape = 's32[1]{0}', space=sflag, size = 0x4, scoped, tag = 'scoped memory for colbert_pairwise_distill_loss.1']
    #allocation6 [shape = 's32[1]{0}', space=sflag, size = 0x4, scoped, tag = 'scoped memory for colbert_pairwise_distill_loss.1']
    #allocation7 [shape = 'u8[8192]{0}', space=vmem, size = 0x2000, scoped, tag = 'input window, operand 1, single buffered']
    #allocation8 [shape = 's32[1]{0}', space=sflag, size = 0x4, scoped, tag = 'scoped memory for colbert_pairwise_distill_loss.1']
    #allocation9 [shape = 'u8[8192]{0}', space=vmem, size = 0x2000, scoped, tag = 'input window, operand 2, single buffered']
    #allocation10 [shape = 'u8[16384]{0}', space=vmem, size = 0x4000, scoped, tag = 'input window, operand 3, single buffered']
    #allocation11 [shape = 's32[1]{0}', space=sflag, size = 0x4, scoped, tag = 'scoped memory for colbert_pairwise_distill_loss.1']
    #allocation12 [shape = 'u8[16384]{0}', space=vmem, size = 0x4000, scoped, tag = 'input window, operand 4, single buffered']
    #allocation13 [shape = 'u8[2048]{0}', space=vmem, size = 0x800, scoped, tag = 'output window, operand 0, single buffered']
    #allocation14 [shape = 'u8[2048]{0}', space=vmem, size = 0x800, scoped, tag = 'output window, operand 1, single buffered']
    #allocation15 [shape = 's32[1]{0}', space=sflag, size = 0x4, scoped, tag = 'scoped memory for colbert_pairwise_distill_loss.1']
    %12 = vsyncpa [#allocation5], 0
    %13 = vsyncpa [#allocation8], 0
    %14 = vsyncpa [#allocation11], 0
    %15 = vsyncpa [#allocation6], 0
    %16 = vsyncpa [#allocation15], 0
    // Predicated region
    $region2: #{colbert_pairwise_distill_loss.1} parent=1 // pred_check
      _
    $region3: #{colbert_pairwise_distill_loss.1} parent=1 // pred_check_branch
      %18 = sbr.rel (0) target = $region5
    $region4: #{colbert_pairwise_distill_loss.1} parent=1 // pred_region
      %s20 = ssub.s32 256, 256
      %21 = vsyncadd [#allocation5], %s20
      %s22 = sshll.u32 [#allocation4], 4
      %s23 = int_to_ptr.vmem [resolvable:$true] %s22
      %28 = dma.hbm_to_vmem [thread:$0]  %s0, 256, %s23, [#allocation5], 64, 64, 4
    $region5: #{colbert_pairwise_distill_loss.1} parent=1 // pred_fallthru
      _
    // Predicated region
    $region6: #{colbert_pairwise_distill_loss.1} parent=1 // pred_check
      _
    $region7: #{colbert_pairwise_distill_loss.1} parent=1 // pred_check_branch
      %30 = sbr.rel (0) target = $region9
    $region8: #{colbert_pairwise_distill_loss.1} parent=1 // pred_region
      %s32 = ssub.s32 256, 256
      %33 = vsyncadd [#allocation8], %s32
      %s34 = sshll.u32 [#allocation7], 4
      %s35 = int_to_ptr.vmem [resolvable:$true] %s34
      %40 = dma.hbm_to_vmem [thread:$0]  %s1, 256, %s35, [#allocation8], 64, 64, 4
    $region9: #{colbert_pairwise_distill_loss.1} parent=1 // pred_fallthru
      _
    // Predicated region
    $region10: #{colbert_pairwise_distill_loss.1} parent=1 // pred_check
      _
    $region11: #{colbert_pairwise_distill_loss.1} parent=1 // pred_check_branch
      %42 = sbr.rel (0) target = $region13
    $region12: #{colbert_pairwise_distill_loss.1} parent=1 // pred_region
      %s44 = ssub.s32 256, 256
      %45 = vsyncadd [#allocation8], %s44
      %s46 = sshll.u32 [#allocation9], 4
      %s47 = int_to_ptr.vmem [resolvable:$true] %s46
      %52 = dma.hbm_to_vmem [thread:$0]  %s2, 256, %s47, [#allocation8], 64, 64, 4
    $region13: #{colbert_pairwise_distill_loss.1} parent=1 // pred_fallthru
      _
    // Predicated region
    $region14: #{colbert_pairwise_distill_loss.1} parent=1 // pred_check
      _
    $region15: #{colbert_pairwise_distill_loss.1} parent=1 // pred_check_branch
      %54 = sbr.rel (0) target = $region17
    $region16: #{colbert_pairwise_distill_loss.1} parent=1 // pred_region
      %s56 = ssub.s32 512, 512
      %57 = vsyncadd [#allocation11], %s56
      %s58 = sshll.u32 [#allocation10], 4
      %s59 = int_to_ptr.vmem [resolvable:$true] %s58
      %64 = dma.hbm_to_vmem [thread:$0]  %s3, 512, %s59, [#allocation11], 64, 64, 4
    $region17: #{colbert_pairwise_distill_loss.1} parent=1 // pred_fallthru
      _
    // Predicated region
    $region18: #{colbert_pairwise_distill_loss.1} parent=1 // pred_check
      _
    $region19: #{colbert_pairwise_distill_loss.1} parent=1 // pred_check_branch
      %66 = sbr.rel (0) target = $region21
    $region20: #{colbert_pairwise_distill_loss.1} parent=1 // pred_region
      %s68 = ssub.s32 512, 512
      %69 = vsyncadd [#allocation11], %s68
      %s70 = sshll.u32 [#allocation12], 4
      %s71 = int_to_ptr.vmem [resolvable:$true] %s70
      %76 = dma.hbm_to_vmem [thread:$0]  %s4, 512, %s71, [#allocation11], 64, 64, 4
    $region21: #{colbert_pairwise_distill_loss.1} parent=1 // pred_fallthru
      _
    // Predicated region
    $region22: #{colbert_pairwise_distill_loss.1} parent=1 // pred_check
      _
    $region23: #{colbert_pairwise_distill_loss.1} parent=1 // pred_check_branch
      %78 = sbr.rel (0) target = $region25
    $region24: #{colbert_pairwise_distill_loss.1} parent=1 // pred_region
      %79 = dma.done [#allocation5], 256
    $region25: #{colbert_pairwise_distill_loss.1} parent=1 // pred_fallthru
      _
    // Predicated region
    $region26: #{colbert_pairwise_distill_loss.1} parent=1 // pred_check
      _
    $region27: #{colbert_pairwise_distill_loss.1} parent=1 // pred_check_branch
      %81 = sbr.rel (0) target = $region29
    $region28: #{colbert_pairwise_distill_loss.1} parent=1 // pred_region
      %82 = dma.done [#allocation8], 256
    $region29: #{colbert_pairwise_distill_loss.1} parent=1 // pred_fallthru
      _
    // Predicated region
    $region30: #{colbert_pairwise_distill_loss.1} parent=1 // pred_check
      _
    $region31: #{colbert_pairwise_distill_loss.1} parent=1 // pred_check_branch
      %84 = sbr.rel (0) target = $region33
    $region32: #{colbert_pairwise_distill_loss.1} parent=1 // pred_region
      %85 = dma.done [#allocation8], 256
    $region33: #{colbert_pairwise_distill_loss.1} parent=1 // pred_fallthru
      _
    // Predicated region
    $region34: #{colbert_pairwise_distill_loss.1} parent=1 // pred_check
      _
    $region35: #{colbert_pairwise_distill_loss.1} parent=1 // pred_check_branch
      %87 = sbr.rel (0) target = $region37
    $region36: #{colbert_pairwise_distill_loss.1} parent=1 // pred_region
      %88 = dma.done [#allocation11], 512
    $region37: #{colbert_pairwise_distill_loss.1} parent=1 // pred_fallthru
      _
    // Predicated region
    $region38: #{colbert_pairwise_distill_loss.1} parent=1 // pred_check
      _
    $region39: #{colbert_pairwise_distill_loss.1} parent=1 // pred_check_branch
      %90 = sbr.rel (0) target = $region41
    $region40: #{colbert_pairwise_distill_loss.1} parent=1 // pred_region
      %91 = dma.done [#allocation11], 512
    $region41: #{colbert_pairwise_distill_loss.1} parent=1 // pred_fallthru
      _
    %v93 = vld [vmem:[#allocation10] sm:$0xf]
    %v94 = vld [vmem:[#allocation10 + $0x4] sm:$0xf]
    %v95 = vld [vmem:[#allocation10 + $0x8] sm:$0xf]
    %v96 = vld [vmem:[#allocation10 + $0xc] sm:$0xf]
    %v97 = vld [vmem:[#allocation10 + $0x10] sm:$0xf]
    %v98 = vld [vmem:[#allocation10 + $0x14] sm:$0xf]
    %v99 = vld [vmem:[#allocation10 + $0x18] sm:$0xf]
    %v100 = vld [vmem:[#allocation10 + $0x1c] sm:$0xf]
    %v101 = vld [vmem:[#allocation7] sm:$0xf]
    %v102 = vld [vmem:[#allocation7 + $0x4] sm:$0xf]
    %v103 = vld [vmem:[#allocation7 + $0x8] sm:$0xf]
    %v104 = vld [vmem:[#allocation7 + $0xc] sm:$0xf]
    %v113 = vunpack.c.l.b16 %v93
    %v114 = vunpack.c.l.b16 %v94
    %v115 = vunpack.c.l.b16 %v95
    %v116 = vunpack.c.l.b16 %v96
    %v117 = vunpack.c.l.b16 %v97
    %v118 = vunpack.c.l.b16 %v98
    %v119 = vunpack.c.l.b16 %v99
    %v120 = vunpack.c.l.b16 %v100
    %v121 = vpack.c.b16 %v114, %v113
    %v122 = vpack.c.b16 %v116, %v115
    %v123 = vpack.c.b16 %v118, %v117
    %v124 = vpack.c.b16 %v120, %v119
    %v129 = vunpack.c.l.b16 %v101
    %v130 = vunpack.c.l.b16 %v102
    %v131 = vunpack.c.l.b16 %v103
    %v132 = vunpack.c.l.b16 %v104
    %v133 = vpack.c.b16 %v130, %v129
    %v134 = vpack.c.b16 %v132, %v131
    %vm137 = vcmask 261120
    %v139 = vsel %vm137, %v121, 0
    %v142 = vsel %vm137, %v122, 0
    %v145 = vsel %vm137, %v123, 0
    %v148 = vsel %vm137, %v124, 0
    %150 = vmatprep.subr.bf16.mxu0 0
    %151 = vmatpush1.bf16.msra.mxu0 %v133
    %152 = vmatprep.subr.bf16.mxu0 0
    %153 = vmatpush1.bf16.msra.mxu0 %v134
    %154 = vmatprep.subr.bf16.mxu0 0
    %155 = vmatpush1.bf16.msra.mxu0 0
    %156 = vmatprep.subr.bf16.mxu0 0
    %157 = vmatpush1.bf16.msra.mxu0 0
    %158 = vmatprep.subr.bf16.mxu0 0
    %159 = vmatpush1.bf16.msra.mxu0 0
    %160 = vmatprep.subr.bf16.mxu0 0
    %161 = vmatpush1.bf16.msra.mxu0 0
    %162 = vmatprep.subr.bf16.mxu0 0
    %163 = vmatpush1.bf16.msra.mxu0 0
    %164 = vmatprep.subr.bf16.mxu0 0
    %165 = vmatpush1.bf16.msra.mxu0 0
    %166 = vmatprep.subr.bf16.mxu0 0
    %167 = vmatpush1.bf16.msra.mxu0 0
    %168 = vmatprep.subr.bf16.mxu0 0
    %169 = vmatpush1.bf16.msra.mxu0 0
    %170 = vmatprep.subr.bf16.mxu0 0
    %171 = vmatpush1.bf16.msra.mxu0 0
    %172 = vmatprep.subr.bf16.mxu0 0
    %173 = vmatpush1.bf16.msra.mxu0 0
    %174 = vmatprep.subr.bf16.mxu0 0
    %175 = vmatpush1.bf16.msra.mxu0 0
    %176 = vmatprep.subr.bf16.mxu0 0
    %177 = vmatpush1.bf16.msra.mxu0 0
    %178 = vmatprep.subr.bf16.mxu0 0
    %179 = vmatpush1.bf16.msra.mxu0 0
    %180 = vmatprep.subr.bf16.mxu0 0
    %181 = vmatpush1.bf16.msra.mxu0 0
    %182 = vmatprep.mubr.bf16.mxu0 0
    %183 = vmatmul.mubr.bf16.gmra.mrb[0].mxu0 %v139
    %v184 = vpop.f32.mrb[0].mxu0
    %v185 = vadd.f32 0.0, %v184
    %v186 = vpop.f32.mrb[0].mxu0
    %v187 = vpop.f32.mrb[0].mxu0
    %v188 = vadd.f32 0.0, %v187
    %v189 = vpop.f32.mrb[0].mxu0
    %190 = vmatprep.mubr.bf16.mxu0 0
    %191 = vmatmul.mubr.bf16.gmra.mrb[0].mxu0 %v142
    %v192 = vpop.f32.mrb[0].mxu0
    %v193 = vadd.f32 0.0, %v192
    %v194 = vpop.f32.mrb[0].mxu0
    %v195 = vpop.f32.mrb[0].mxu0
    %v196 = vadd.f32 0.0, %v195
    %v197 = vpop.f32.mrb[0].mxu0
    %198 = vmatprep.mubr.bf16.mxu0 0
    %199 = vmatmul.mubr.bf16.gmra.mrb[0].mxu0 %v145
    %v200 = vpop.f32.mrb[0].mxu0
    %v201 = vadd.f32 0.0, %v200
    %v202 = vpop.f32.mrb[0].mxu0
    %v203 = vpop.f32.mrb[0].mxu0
    %v204 = vadd.f32 0.0, %v203
    %v205 = vpop.f32.mrb[0].mxu0
    %206 = vmatprep.mubr.bf16.mxu0 0
    %207 = vmatmul.mubr.bf16.gmra.mrb[0].mxu0 %v148
    %v208 = vpop.f32.mrb[0].mxu0
    %v209 = vadd.f32 0.0, %v208
    %v210 = vpop.f32.mrb[0].mxu0
    %v211 = vpop.f32.mrb[0].mxu0
    %v212 = vadd.f32 0.0, %v211
    %v213 = vpop.f32.mrb[0].mxu0
    %214 = vdwg.mxu0
    %v215 = vsel %vm137, %v185, -inf
    %v216 = vsel %vm137, %v188, -inf
    %v217 = vmax.f32 %v215, %v216
    %v218 = vrot.slane %v217, 4
    %v219 = vmax.f32 %v217, %v218
    %v220 = vrot.slane %v219, 2
    %v221 = vmax.f32 %v219, %v220
    %v222 = vrot.slane %v221, 1
    %v223 = vmax.f32 %v221, %v222
    %vm224 = vcmask 253952
    %225 = vst.msk [vmem:[#allocation2] sm:$0x1] %vm224, %v223
    %v226 = vsel %vm137, %v193, -inf
    %v227 = vsel %vm137, %v196, -inf
    %v228 = vmax.f32 %v226, %v227
    %v229 = vrot.slane %v228, 4
    %v230 = vmax.f32 %v228, %v229
    %v231 = vrot.slane %v230, 2
    %v232 = vmax.f32 %v230, %v231
    %v233 = vrot.slane %v232, 1
    %v234 = vmax.f32 %v232, %v233
    %235 = vst.msk [vmem:[#allocation2 + $0x1] sm:$0x1] %vm224, %v234
    %v236 = vsel %vm137, %v201, -inf
    %v237 = vsel %vm137, %v204, -inf
    %v238 = vmax.f32 %v236, %v237
    %v239 = vrot.slane %v238, 4
    %v240 = vmax.f32 %v238, %v239
    %v241 = vrot.slane %v240, 2
    %v242 = vmax.f32 %v240, %v241
    %v243 = vrot.slane %v242, 1
    %v244 = vmax.f32 %v242, %v243
    %245 = vst.msk [vmem:[#allocation2 + $0x2] sm:$0x1] %vm224, %v244
    %v246 = vsel %vm137, %v209, -inf
    %v247 = vsel %vm137, %v212, -inf
    %v248 = vmax.f32 %v246, %v247
    %v249 = vrot.slane %v248, 4
    %v250 = vmax.f32 %v248, %v249
    %v251 = vrot.slane %v250, 2
    %v252 = vmax.f32 %v250, %v251
    %v253 = vrot.slane %v252, 1
    %v254 = vmax.f32 %v252, %v253
    %255 = vst.msk [vmem:[#allocation2 + $0x3] sm:$0x1] %vm224, %v254
    %v256 = vld [vmem:[#allocation2] sm:$0xf]
    %v257 = vpack.c.bf16 %v256, %v256
    %v258 = vld [vmem:[#allocation4] sm:$0xf]
    %v259 = vld [vmem:[#allocation4 + $0x4] sm:$0xf]
    %v260 = vld [vmem:[#allocation4 + $0x8] sm:$0xf]
    %v261 = vld [vmem:[#allocation4 + $0xc] sm:$0xf]
    %v266 = vunpack.c.l.b16 %v258
    %v267 = vunpack.c.l.b16 %v259
    %v268 = vunpack.c.l.b16 %v260
    %v269 = vunpack.c.l.b16 %v261
    %v270 = vpack.c.b16 %v267, %v266
    %v271 = vpack.c.b16 %v269, %v268
    %v275 = vsel %vm137, %v257, 0
    %277 = vmatprep.subr.bf16.mxu0 0
    %278 = vmatpush1.bf16.msra.mxu0 %v270
    %279 = vmatprep.subr.bf16.mxu0 0
    %280 = vmatpush1.bf16.msra.mxu0 %v271
    %281 = vmatprep.subr.bf16.mxu0 0
    %282 = vmatpush1.bf16.msra.mxu0 0
    %283 = vmatprep.subr.bf16.mxu0 0
    %284 = vmatpush1.bf16.msra.mxu0 0
    %285 = vmatprep.subr.bf16.mxu0 0
    %286 = vmatpush1.bf16.msra.mxu0 0
    %287 = vmatprep.subr.bf16.mxu0 0
    %288 = vmatpush1.bf16.msra.mxu0 0
    %289 = vmatprep.subr.bf16.mxu0 0
    %290 = vmatpush1.bf16.msra.mxu0 0
    %291 = vmatprep.subr.bf16.mxu0 0
    %292 = vmatpush1.bf16.msra.mxu0 0
    %293 = vmatprep.subr.bf16.mxu0 0
    %294 = vmatpush1.bf16.msra.mxu0 0
    %295 = vmatprep.subr.bf16.mxu0 0
    %296 = vmatpush1.bf16.msra.mxu0 0
    %297 = vmatprep.subr.bf16.mxu0 0
    %298 = vmatpush1.bf16.msra.mxu0 0
    %299 = vmatprep.subr.bf16.mxu0 0
    %300 = vmatpush1.bf16.msra.mxu0 0
    %301 = vmatprep.subr.bf16.mxu0 0
    %302 = vmatpush1.bf16.msra.mxu0 0
    %303 = vmatprep.subr.bf16.mxu0 0
    %304 = vmatpush1.bf16.msra.mxu0 0
    %305 = vmatprep.subr.bf16.mxu0 0
    %306 = vmatpush1.bf16.msra.mxu0 0
    %307 = vmatprep.subr.bf16.mxu0 0
    %308 = vmatpush1.bf16.msra.mxu0 0
    %309 = vmatprep.mubr.bf16.mxu0 0
    %310 = vmatmul.mubr.bf16.gmra.mrb[0].mxu0 %v275
    %v311 = vpop.f32.mrb[0].mxu0
    %v312 = vadd.f32 0.0, %v311
    %v313 = vpop.f32.mrb[0].mxu0
    %v314 = vpop.f32.mrb[0].mxu0
    %v315 = vpop.f32.mrb[0].mxu0
    %316 = vdwg.mxu0
    %317 = vst [vmem:[#allocation13] sm:$0xf] %v312
    %v318 = vld [vmem:[#allocation12] sm:$0xf]
    %v319 = vld [vmem:[#allocation12 + $0x4] sm:$0xf]
    %v320 = vld [vmem:[#allocation12 + $0x8] sm:$0xf]
    %v321 = vld [vmem:[#allocation12 + $0xc] sm:$0xf]
    %v322 = vld [vmem:[#allocation12 + $0x10] sm:$0xf]
    %v323 = vld [vmem:[#allocation12 + $0x14] sm:$0xf]
    %v324 = vld [vmem:[#allocation12 + $0x18] sm:$0xf]
    %v325 = vld [vmem:[#allocation12 + $0x1c] sm:$0xf]
    %v326 = vld [vmem:[#allocation9] sm:$0xf]
    %v327 = vld [vmem:[#allocation9 + $0x4] sm:$0xf]
    %v328 = vld [vmem:[#allocation9 + $0x8] sm:$0xf]
    %v329 = vld [vmem:[#allocation9 + $0xc] sm:$0xf]
    %v338 = vunpack.c.l.b16 %v318
    %v339 = vunpack.c.l.b16 %v319
    %v340 = vunpack.c.l.b16 %v320
    %v341 = vunpack.c.l.b16 %v321
    %v342 = vunpack.c.l.b16 %v322
    %v343 = vunpack.c.l.b16 %v323
    %v344 = vunpack.c.l.b16 %v324
    %v345 = vunpack.c.l.b16 %v325
    %v346 = vpack.c.b16 %v339, %v338
    %v347 = vpack.c.b16 %v341, %v340
    %v348 = vpack.c.b16 %v343, %v342
    %v349 = vpack.c.b16 %v345, %v344
    %v354 = vunpack.c.l.b16 %v326
    %v355 = vunpack.c.l.b16 %v327
    %v356 = vunpack.c.l.b16 %v328
    %v357 = vunpack.c.l.b16 %v329
    %v358 = vpack.c.b16 %v355, %v354
    %v359 = vpack.c.b16 %v357, %v356
    %v363 = vsel %vm137, %v346, 0
    %v366 = vsel %vm137, %v347, 0
    %v369 = vsel %vm137, %v348, 0
    %v372 = vsel %vm137, %v349, 0
    %374 = vmatprep.subr.bf16.mxu0 0
    %375 = vmatpush1.bf16.msra.mxu0 %v358
    %376 = vmatprep.subr.bf16.mxu0 0
    %377 = vmatpush1.bf16.msra.mxu0 %v359
    %378 = vmatprep.subr.bf16.mxu0 0
    %379 = vmatpush1.bf16.msra.mxu0 0
    %380 = vmatprep.subr.bf16.mxu0 0
    %381 = vmatpush1.bf16.msra.mxu0 0
    %382 = vmatprep.subr.bf16.mxu0 0
    %383 = vmatpush1.bf16.msra.mxu0 0
    %384 = vmatprep.subr.bf16.mxu0 0
    %385 = vmatpush1.bf16.msra.mxu0 0
    %386 = vmatprep.subr.bf16.mxu0 0
    %387 = vmatpush1.bf16.msra.mxu0 0
    %388 = vmatprep.subr.bf16.mxu0 0
    %389 = vmatpush1.bf16.msra.mxu0 0
    %390 = vmatprep.subr.bf16.mxu0 0
    %391 = vmatpush1.bf16.msra.mxu0 0
    %392 = vmatprep.subr.bf16.mxu0 0
    %393 = vmatpush1.bf16.msra.mxu0 0
    %394 = vmatprep.subr.bf16.mxu0 0
    %395 = vmatpush1.bf16.msra.mxu0 0
    %396 = vmatprep.subr.bf16.mxu0 0
    %397 = vmatpush1.bf16.msra.mxu0 0
    %398 = vmatprep.subr.bf16.mxu0 0
    %399 = vmatpush1.bf16.msra.mxu0 0
    %400 = vmatprep.subr.bf16.mxu0 0
    %401 = vmatpush1.bf16.msra.mxu0 0
    %402 = vmatprep.subr.bf16.mxu0 0
    %403 = vmatpush1.bf16.msra.mxu0 0
    %404 = vmatprep.subr.bf16.mxu0 0
    %405 = vmatpush1.bf16.msra.mxu0 0
    %406 = vmatprep.mubr.bf16.mxu0 0
    %407 = vmatmul.mubr.bf16.gmra.mrb[0].mxu0 %v363
    %v408 = vpop.f32.mrb[0].mxu0
    %v409 = vadd.f32 0.0, %v408
    %v410 = vpop.f32.mrb[0].mxu0
    %v411 = vpop.f32.mrb[0].mxu0
    %v412 = vadd.f32 0.0, %v411
    %v413 = vpop.f32.mrb[0].mxu0
    %414 = vmatprep.mubr.bf16.mxu0 0
    %415 = vmatmul.mubr.bf16.gmra.mrb[0].mxu0 %v366
    %v416 = vpop.f32.mrb[0].mxu0
    %v417 = vadd.f32 0.0, %v416
    %v418 = vpop.f32.mrb[0].mxu0
    %v419 = vpop.f32.mrb[0].mxu0
    %v420 = vadd.f32 0.0, %v419
    %v421 = vpop.f32.mrb[0].mxu0
    %422 = vmatprep.mubr.bf16.mxu0 0
    %423 = vmatmul.mubr.bf16.gmra.mrb[0].mxu0 %v369
    %v424 = vpop.f32.mrb[0].mxu0
    %v425 = vadd.f32 0.0, %v424
    %v426 = vpop.f32.mrb[0].mxu0
    %v427 = vpop.f32.mrb[0].mxu0
    %v428 = vadd.f32 0.0, %v427
    %v429 = vpop.f32.mrb[0].mxu0
    %430 = vmatprep.mubr.bf16.mxu0 0
    %431 = vmatmul.mubr.bf16.gmra.mrb[0].mxu0 %v372
    %v432 = vpop.f32.mrb[0].mxu0
    %v433 = vadd.f32 0.0, %v432
    %v434 = vpop.f32.mrb[0].mxu0
    %v435 = vpop.f32.mrb[0].mxu0
    %v436 = vadd.f32 0.0, %v435
    %v437 = vpop.f32.mrb[0].mxu0
    %438 = vdwg.mxu0
    %v439 = vsel %vm137, %v409, -inf
    %v440 = vsel %vm137, %v412, -inf
    %v441 = vmax.f32 %v439, %v440
    %v442 = vrot.slane %v441, 4
    %v443 = vmax.f32 %v441, %v442
    %v444 = vrot.slane %v443, 2
    %v445 = vmax.f32 %v443, %v444
    %v446 = vrot.slane %v445, 1
    %v447 = vmax.f32 %v445, %v446
    %448 = vst.msk [vmem:[#allocation3] sm:$0x1] %vm224, %v447
    %v449 = vsel %vm137, %v417, -inf
    %v450 = vsel %vm137, %v420, -inf
    %v451 = vmax.f32 %v449, %v450
    %v452 = vrot.slane %v451, 4
    %v453 = vmax.f32 %v451, %v452
    %v454 = vrot.slane %v453, 2
    %v455 = vmax.f32 %v453, %v454
    %v456 = vrot.slane %v455, 1
    %v457 = vmax.f32 %v455, %v456
    %458 = vst.msk [vmem:[#allocation3 + $0x1] sm:$0x1] %vm224, %v457
    %v459 = vsel %vm137, %v425, -inf
    %v460 = vsel %vm137, %v428, -inf
    %v461 = vmax.f32 %v459, %v460
    %v462 = vrot.slane %v461, 4
    %v463 = vmax.f32 %v461, %v462
    %v464 = vrot.slane %v463, 2
    %v465 = vmax.f32 %v463, %v464
    %v466 = vrot.slane %v465, 1
    %v467 = vmax.f32 %v465, %v466
    %468 = vst.msk [vmem:[#allocation3 + $0x2] sm:$0x1] %vm224, %v467
    %v469 = vsel %vm137, %v433, -inf
    %v470 = vsel %vm137, %v436, -inf
    %v471 = vmax.f32 %v469, %v470
    %v472 = vrot.slane %v471, 4
    %v473 = vmax.f32 %v471, %v472
    %v474 = vrot.slane %v473, 2
    %v475 = vmax.f32 %v473, %v474
    %v476 = vrot.slane %v475, 1
    %v477 = vmax.f32 %v475, %v476
    %478 = vst.msk [vmem:[#allocation3 + $0x3] sm:$0x1] %vm224, %v477
    %v479 = vld [vmem:[#allocation3] sm:$0xf]
    %v480 = vpack.c.bf16 %v479, %v479
    %v481 = vld [vmem:[#allocation4] sm:$0xf]
    %v482 = vld [vmem:[#allocation4 + $0x4] sm:$0xf]
    %v483 = vld [vmem:[#allocation4 + $0x8] sm:$0xf]
    %v484 = vld [vmem:[#allocation4 + $0xc] sm:$0xf]
    %v489 = vunpack.c.l.b16 %v481
    %v490 = vunpack.c.l.b16 %v482
    %v491 = vunpack.c.l.b16 %v483
    %v492 = vunpack.c.l.b16 %v484
    %v493 = vpack.c.b16 %v490, %v489
    %v494 = vpack.c.b16 %v492, %v491
    %v498 = vsel %vm137, %v480, 0
    %500 = vmatprep.subr.bf16.mxu0 0
    %501 = vmatpush1.bf16.msra.mxu0 %v493
    %502 = vmatprep.subr.bf16.mxu0 0
    %503 = vmatpush1.bf16.msra.mxu0 %v494
    %504 = vmatprep.subr.bf16.mxu0 0
    %505 = vmatpush1.bf16.msra.mxu0 0
    %506 = vmatprep.subr.bf16.mxu0 0
    %507 = vmatpush1.bf16.msra.mxu0 0
    %508 = vmatprep.subr.bf16.mxu0 0
    %509 = vmatpush1.bf16.msra.mxu0 0
    %510 = vmatprep.subr.bf16.mxu0 0
    %511 = vmatpush1.bf16.msra.mxu0 0
    %512 = vmatprep.subr.bf16.mxu0 0
    %513 = vmatpush1.bf16.msra.mxu0 0
    %514 = vmatprep.subr.bf16.mxu0 0
    %515 = vmatpush1.bf16.msra.mxu0 0
    %516 = vmatprep.subr.bf16.mxu0 0
    %517 = vmatpush1.bf16.msra.mxu0 0
    %518 = vmatprep.subr.bf16.mxu0 0
    %519 = vmatpush1.bf16.msra.mxu0 0
    %520 = vmatprep.subr.bf16.mxu0 0
    %521 = vmatpush1.bf16.msra.mxu0 0
    %522 = vmatprep.subr.bf16.mxu0 0
    %523 = vmatpush1.bf16.msra.mxu0 0
    %524 = vmatprep.subr.bf16.mxu0 0
    %525 = vmatpush1.bf16.msra.mxu0 0
    %526 = vmatprep.subr.bf16.mxu0 0
    %527 = vmatpush1.bf16.msra.mxu0 0
    %528 = vmatprep.subr.bf16.mxu0 0
    %529 = vmatpush1.bf16.msra.mxu0 0
    %530 = vmatprep.subr.bf16.mxu0 0
    %531 = vmatpush1.bf16.msra.mxu0 0
    %532 = vmatprep.mubr.bf16.mxu0 0
    %533 = vmatmul.mubr.bf16.gmra.mrb[0].mxu0 %v498
    %v534 = vpop.f32.mrb[0].mxu0
    %v535 = vadd.f32 0.0, %v534
    %v536 = vpop.f32.mrb[0].mxu0
    %v537 = vpop.f32.mrb[0].mxu0
    %v538 = vpop.f32.mrb[0].mxu0
    %539 = vdwg.mxu0
    %540 = vst [vmem:[#allocation14] sm:$0xf] %v535
    // Predicated region
    $region42: #{colbert_pairwise_distill_loss.1} parent=1 // pred_check
      _
    $region43: #{colbert_pairwise_distill_loss.1} parent=1 // pred_check_branch
      %542 = sbr.rel (0) target = $region45
    $region44: #{colbert_pairwise_distill_loss.1} parent=1 // pred_region
      %s544 = ssub.s32 64, 64
      %545 = vsyncadd [#allocation6], %s544
      %s547 = sshll.u32 [#allocation13], 4
      %s548 = int_to_ptr.vmem [resolvable:$true] %s547
      %550 = dma.vmem_to_hbm [thread:$0]  %s548, 64, %s5, [#allocation6]
    $region45: #{colbert_pairwise_distill_loss.1} parent=1 // pred_fallthru
      _
    // Predicated region
    $region46: #{colbert_pairwise_distill_loss.1} parent=1 // pred_check
      _
    $region47: #{colbert_pairwise_distill_loss.1} parent=1 // pred_check_branch
      %552 = sbr.rel (0) target = $region49
    $region48: #{colbert_pairwise_distill_loss.1} parent=1 // pred_region
      %s554 = ssub.s32 64, 64
      %555 = vsyncadd [#allocation15], %s554
      %s557 = sshll.u32 [#allocation14], 4
      %s558 = int_to_ptr.vmem [resolvable:$true] %s557
      %560 = dma.vmem_to_hbm [thread:$0]  %s558, 64, %s6, [#allocation15]
    $region49: #{colbert_pairwise_distill_loss.1} parent=1 // pred_fallthru
      _
    // Predicated region
    $region50: #{colbert_pairwise_distill_loss.1} parent=1 // pred_check
      _
    $region51: #{colbert_pairwise_distill_loss.1} parent=1 // pred_check_branch
      %562 = sbr.rel (0) target = $region53
    $region52: #{colbert_pairwise_distill_loss.1} parent=1 // pred_region
      %563 = dma.done [#allocation6], 64
    $region53: #{colbert_pairwise_distill_loss.1} parent=1 // pred_fallthru
      _
    // Predicated region
    $region54: #{colbert_pairwise_distill_loss.1} parent=1 // pred_check
      _
    $region55: #{colbert_pairwise_distill_loss.1} parent=1 // pred_check_branch
      %565 = sbr.rel (0) target = $region57
    $region56: #{colbert_pairwise_distill_loss.1} parent=1 // pred_region
      %566 = dma.done [#allocation15], 64
    $region57: #{colbert_pairwise_distill_loss.1} parent=1 // pred_fallthru
      _
    %567 = vsyncpa [#allocation5], 1
    %568 = vsyncpa [#allocation8], 1
    %569 = vsyncpa [#allocation11], 1
    %570 = vsyncpa [#allocation6], 1
    %571 = vsyncpa [#allocation15], 1

</llo_original>
